<compile_context>
chip_gen: v6e
topology: v6e:2x2x1
jax: 0.10.0
libtpu: 0.0.40
codegen_flags: <defaults>
</compile_context>

<pallas_src>
import functools

import jax
import jax.numpy as jnp
from jax.experimental import pallas as pl
from jax.experimental.pallas import tpu as pltpu


def _round_up(n, m):
    return ((n + m - 1) // m) * m


def vae_kernel(
    x_ref, eps_ref,
    e1_w, e1_b, e2_w, e2_b,
    ml_w, ml_b,                      # fused [mu | logvar] head
    d1_w, d1_b, d2_w, d2_b, d3_w, d3_b,
    recon_ref, mulv_ref,
    *, latent_pad, compute_dtype,
):
    def lin(v, w_ref, b_ref):
        # MXU matmul (bf16 or f32 inputs), f32 accumulate, f32 bias add.
        return jnp.dot(v.astype(compute_dtype), w_ref[...],
                       preferred_element_type=jnp.float32) + b_ref[...]

    x = x_ref[...]

    # ---- encoder: Linear -> ReLU -> Linear -> ReLU (ReLU in f32) ----
    h = jnp.maximum(lin(x, e1_w, e1_b), 0.0)
    h = jnp.maximum(lin(h, e2_w, e2_b), 0.0)

    # ---- fused latent heads: one matmul, lane-aligned split ----
    ml = lin(h, ml_w, ml_b)                 # (bt, 2*latent_pad) = [mu | logvar]
    mu = ml[:, :latent_pad]
    logvar = ml[:, latent_pad:]

    # ---- reparameterize (f32 elementwise; exp goes to the EUP) ----
    std = jnp.exp(0.5 * logvar)
    z = mu + eps_ref[...] * std

    # ---- decoder: Linear -> ReLU -> Linear -> ReLU -> Linear ----
    d = jnp.maximum(lin(z, d1_w, d1_b), 0.0)
    d = jnp.maximum(lin(d, d2_w, d2_b), 0.0)
    recon = lin(d, d3_w, d3_b)

    # Lane-dense stores (last dims are multiples of 128).
    recon_ref[...] = recon.astype(recon_ref.dtype)
    mulv_ref[...] = ml.astype(mulv_ref.dtype)


def init_params(key, input_dim, hidden_dim, latent_dim):
    """Deterministic synthetic init. Weights stored (in, out)."""
    dims = [
        ("e1", input_dim, hidden_dim),
        ("e2", hidden_dim, hidden_dim),
        ("mu", hidden_dim, latent_dim),
        ("lv", hidden_dim, latent_dim),
        ("d1", latent_dim, hidden_dim),
        ("d2", hidden_dim, hidden_dim),
        ("d3", hidden_dim, input_dim),
    ]
    params = {}
    for name, fan_in, fan_out in dims:
        key, kw, kb = jax.random.split(key, 3)
        bound = 1.0 / jnp.sqrt(jnp.float32(fan_in))
        params[name + "_w"] = jax.random.uniform(
            kw, (fan_in, fan_out), jnp.float32, -bound, bound)
        params[name + "_b"] = jax.random.uniform(
            kb, (1, fan_out), jnp.float32, -bound, bound)
    return params


@functools.partial(jax.jit, static_argnames=("batch_tile", "use_bf16"))
def vae_forward(x, eps, params, batch_tile=256, use_bf16=False):
    B, input_dim = x.shape
    latent_dim = eps.shape[1]
    hidden_dim = params["e1_w"].shape[1]

    # Pad every feature dim to a multiple of 128 -> lane-dense tiles & stores.
    in_p = _round_up(input_dim, 128)
    hid_p = _round_up(hidden_dim, 128)
    lat_p = _round_up(latent_dim, 128)

    # Large batch tile (amortizes per-step overhead, fills the MXU M dim);
    # shrink to the (8-rounded) batch for small inputs, pad B to a multiple.
    bt = min(batch_tile, _round_up(B, 8))
    B_pad = _round_up(B, bt)

    compute_dtype = jnp.bfloat16 if use_bf16 else jnp.float32

    def pad_w(w, rows, cols):
        w = jnp.pad(w, ((0, rows - w.shape[0]), (0, cols - w.shape[1])))
        return w.astype(compute_dtype)

    def pad_b(b, cols):
        return jnp.pad(b, ((0, 0), (0, cols - b.shape[1]))).astype(jnp.float32)

    e1_w = pad_w(params["e1_w"], in_p, hid_p)
    e1_b = pad_b(params["e1_b"], hid_p)
    e2_w = pad_w(params["e2_w"], hid_p, hid_p)
    e2_b = pad_b(params["e2_b"], hid_p)
    # Fused [mu | logvar] head: one (hid_p, 2*lat_p) matmul.
    ml_w = jnp.concatenate([pad_w(params["mu_w"], hid_p, lat_p),
                            pad_w(params["lv_w"], hid_p, lat_p)], axis=1)
    ml_b = jnp.concatenate([pad_b(params["mu_b"], lat_p),
                            pad_b(params["lv_b"], lat_p)], axis=1)
    d1_w = pad_w(params["d1_w"], lat_p, hid_p)
    d1_b = pad_b(params["d1_b"], hid_p)
    d2_w = pad_w(params["d2_w"], hid_p, hid_p)
    d2_b = pad_b(params["d2_b"], hid_p)
    d3_w = pad_w(params["d3_w"], hid_p, in_p)
    d3_b = pad_b(params["d3_b"], in_p)

    x_p = jnp.pad(x, ((0, B_pad - B), (0, in_p - input_dim))).astype(compute_dtype)
    eps_p = jnp.pad(eps, ((0, B_pad - B), (0, lat_p - latent_dim))).astype(jnp.float32)

    weight_args = [e1_w, e1_b, e2_w, e2_b, ml_w, ml_b,
                   d1_w, d1_b, d2_w, d2_b, d3_w, d3_b]

    grid = (B_pad // bt,)

    def row_spec(ncols):
        return pl.BlockSpec((bt, ncols), lambda i: (i, 0))

    def full_spec(arr):
        # Grid-invariant block (index_map constant) -> fetched once, stays
        # resident in VMEM across all batch tiles.
        return pl.BlockSpec(arr.shape, lambda i: (0, 0))

    in_specs = [row_spec(in_p), row_spec(lat_p)]
    in_specs += [full_spec(a) for a in weight_args]

    out_specs = [row_spec(in_p), row_spec(2 * lat_p)]
    out_shape = (
        jax.ShapeDtypeStruct((B_pad, in_p), jnp.float32),       # recon (padded)
        jax.ShapeDtypeStruct((B_pad, 2 * lat_p), jnp.float32),  # [mu | logvar]
    )

    kernel = functools.partial(vae_kernel, latent_pad=lat_p,
                               compute_dtype=compute_dtype)

    recon_p, mulv = pl.pallas_call(
        kernel,
        out_shape=out_shape,
        grid_spec=pltpu.PrefetchScalarGridSpec(
            num_scalar_prefetch=0,
            grid=grid,
            in_specs=in_specs,
            out_specs=out_specs,
        ),
        compiler_params=pltpu.CompilerParams(
            dimension_semantics=("parallel",),
            vmem_limit_bytes=48 * 1024 * 1024,
        ),
    )(x_p, eps_p, *weight_args)

    # Strip batch/feature padding.
    recon = recon_p[:B, :input_dim]
    mu = mulv[:B, :latent_dim]
    logvar = mulv[:B, lat_p:lat_p + latent_dim]
    return recon, mu, logvar


def vae_forward_ref(x, eps, params):
    """Pure-JAX reference for correctness checking."""
    def lin(v, name):
        return v @ params[name + "_w"] + params[name + "_b"]

    h = jax.nn.relu(lin(x, "e1"))
    h = jax.nn.relu(lin(h, "e2"))
    mu = lin(h, "mu")
    logvar = lin(h, "lv")
    z = mu + eps * jnp.exp(0.5 * logvar)
    d = jax.nn.relu(lin(z, "d1"))
    d = jax.nn.relu(lin(d, "d2"))
    recon = lin(d, "d3")
    return recon, mu, logvar


if __name__ == "__main__":
    input_dim, hidden_dim, latent_dim = 16, 32, 8
    batch = 16

    key = jax.random.PRNGKey(0)
    k_params, k_x, k_eps = jax.random.split(key, 3)

    params = init_params(k_params, input_dim, hidden_dim, latent_dim)
    x = jax.random.normal(k_x, (batch, input_dim), jnp.float32)
    # torch.randn_like(std) -> standard normal noise, generated here
    # deterministically and passed into the kernel.
    # TODO(synk): could be generated in-kernel with pltpu.prng_seed/stateful_normal.
    eps = jax.random.normal(k_eps, (batch, latent_dim), jnp.float32)

    # f32 path (bit-comparable to the reference).
    recon, mu, logvar = vae_forward(x, eps, params)
    jax.block_until_ready((recon, mu, logvar))

    recon_r, mu_r, logvar_r = vae_forward_ref(x, eps, params)
    assert recon.shape == (batch, input_dim)
    assert mu.shape == (batch, latent_dim) and logvar.shape == (batch, latent_dim)
    assert jnp.allclose(recon, recon_r, atol=1e-5, rtol=1e-5)
    assert jnp.allclose(mu, mu_r, atol=1e-5, rtol=1e-5)
    assert jnp.allclose(logvar, logvar_r, atol=1e-5, rtol=1e-5)

    # Odd batch size: exercises batch padding (no silently dropped rows).
    recon_o, mu_o, logvar_o = vae_forward(x[:13], eps[:13], params)
    jax.block_until_ready((recon_o, mu_o, logvar_o))
    assert jnp.allclose(recon_o, recon_r[:13], atol=1e-5, rtol=1e-5)
    assert jnp.allclose(mu_o, mu_r[:13], atol=1e-5, rtol=1e-5)

    # bf16 MXU fast path (v6e/v7x); looser tolerance for bf16 matmul inputs.
    recon_b, mu_b, logvar_b = vae_forward(x, eps, params, use_bf16=True)
    jax.block_until_ready((recon_b, mu_b, logvar_b))
    assert jnp.allclose(recon_b, recon_r, atol=1e-1, rtol=1e-1)
    assert jnp.allclose(mu_b, mu_r, atol=1e-1, rtol=1e-1)

    print("KERNEL_OK")
</pallas_src>

<mosaic_0001>
module attributes {stable_mosaic.version = 11 : i64} {
  func.func @vae_kernel(%arg0: i32, %arg1: memref<16x128xf32, #tpu.memory_space<vmem>>, %arg2: memref<16x128xf32, #tpu.memory_space<vmem>>, %arg3: memref<128x128xf32, #tpu.memory_space<vmem>>, %arg4: memref<1x128xf32, #tpu.memory_space<vmem>>, %arg5: memref<128x128xf32, #tpu.memory_space<vmem>>, %arg6: memref<1x128xf32, #tpu.memory_space<vmem>>, %arg7: memref<128x256xf32, #tpu.memory_space<vmem>>, %arg8: memref<1x256xf32, #tpu.memory_space<vmem>>, %arg9: memref<128x128xf32, #tpu.memory_space<vmem>>, %arg10: memref<1x128xf32, #tpu.memory_space<vmem>>, %arg11: memref<128x128xf32, #tpu.memory_space<vmem>>, %arg12: memref<1x128xf32, #tpu.memory_space<vmem>>, %arg13: memref<128x128xf32, #tpu.memory_space<vmem>>, %arg14: memref<1x128xf32, #tpu.memory_space<vmem>>, %arg15: memref<16x128xf32, #tpu.memory_space<vmem>>, %arg16: memref<16x256xf32, #tpu.memory_space<vmem>>) attributes {dimension_semantics = [#tpu.dimension_semantics<parallel>], iteration_bounds = array<i64: 1>, scalar_prefetch = 0 : i64, scratch_operands = 0 : i64, tpu.core_type = #tpu.core_type<tc>, window_params = [{transform_indices = @transform_0, window_bounds = array<i64: 16, 128>}, {transform_indices = @transform_1, window_bounds = array<i64: 16, 128>}, {pipeline_mode = #tpu.pipeline_mode<synchronous>, transform_indices = @transform_2, window_bounds = array<i64: 128, 128>}, {pipeline_mode = #tpu.pipeline_mode<synchronous>, transform_indices = @transform_3, window_bounds = array<i64: 1, 128>}, {pipeline_mode = #tpu.pipeline_mode<synchronous>, transform_indices = @transform_4, window_bounds = array<i64: 128, 128>}, {pipeline_mode = #tpu.pipeline_mode<synchronous>, transform_indices = @transform_5, window_bounds = array<i64: 1, 128>}, {pipeline_mode = #tpu.pipeline_mode<synchronous>, transform_indices = @transform_6, window_bounds = array<i64: 128, 256>}, {pipeline_mode = #tpu.pipeline_mode<synchronous>, transform_indices = @transform_7, window_bounds = array<i64: 1, 256>}, {pipeline_mode = #tpu.pipeline_mode<synchronous>, transform_indices = @transform_8, window_bounds = array<i64: 128, 128>}, {pipeline_mode = #tpu.pipeline_mode<synchronous>, transform_indices = @transform_9, window_bounds = array<i64: 1, 128>}, {pipeline_mode = #tpu.pipeline_mode<synchronous>, transform_indices = @transform_10, window_bounds = array<i64: 128, 128>}, {pipeline_mode = #tpu.pipeline_mode<synchronous>, transform_indices = @transform_11, window_bounds = array<i64: 1, 128>}, {pipeline_mode = #tpu.pipeline_mode<synchronous>, transform_indices = @transform_12, window_bounds = array<i64: 128, 128>}, {pipeline_mode = #tpu.pipeline_mode<synchronous>, transform_indices = @transform_13, window_bounds = array<i64: 1, 128>}, {transform_indices = @transform_14, window_bounds = array<i64: 16, 128>}, {transform_indices = @transform_15, window_bounds = array<i64: 16, 256>}]} {
    %c0 = arith.constant 0 : index
    %c0_0 = arith.constant 0 : index
    %0 = vector.load %arg1[%c0, %c0_0] : memref<16x128xf32, #tpu.memory_space<vmem>>, vector<16x128xf32>
    %c0_1 = arith.constant 0 : index
    %c0_2 = arith.constant 0 : index
    %1 = vector.load %arg3[%c0_1, %c0_2] : memref<128x128xf32, #tpu.memory_space<vmem>>, vector<128x128xf32>
    %cst = arith.constant dense<0.000000e+00> : vector<16x128xf32>
    %2 = tpu.matmul %0, %1, %cst {dimension_numbers = #tpu.dot_dimension_numbers<[1], [0], [0], [1], [0, 0, 1, 1], [], []>} : vector<16x128xf32>, vector<128x128xf32>, vector<16x128xf32> -> vector<16x128xf32>
    %c0_3 = arith.constant 0 : index
    %c0_4 = arith.constant 0 : index
    %3 = vector.load %arg4[%c0_3, %c0_4] : memref<1x128xf32, #tpu.memory_space<vmem>>, vector<1x128xf32>
    %4 = vector.broadcast %3 : vector<1x128xf32> to vector<16x128xf32>
    %5 = arith.addf %2, %4 : vector<16x128xf32>
    %cst_5 = arith.constant 0.000000e+00 : f32
    %6 = vector.broadcast %cst_5 : f32 to vector<16x128xf32>
    %7 = arith.maximumf %5, %6 : vector<16x128xf32>
    %c0_6 = arith.constant 0 : index
    %c0_7 = arith.constant 0 : index
    %8 = vector.load %arg5[%c0_6, %c0_7] : memref<128x128xf32, #tpu.memory_space<vmem>>, vector<128x128xf32>
    %cst_8 = arith.constant dense<0.000000e+00> : vector<16x128xf32>
    %9 = tpu.matmul %7, %8, %cst_8 {dimension_numbers = #tpu.dot_dimension_numbers<[1], [0], [0], [1], [0, 0, 1, 1], [], []>} : vector<16x128xf32>, vector<128x128xf32>, vector<16x128xf32> -> vector<16x128xf32>
    %c0_9 = arith.constant 0 : index
    %c0_10 = arith.constant 0 : index
    %10 = vector.load %arg6[%c0_9, %c0_10] : memref<1x128xf32, #tpu.memory_space<vmem>>, vector<1x128xf32>
    %11 = vector.broadcast %10 : vector<1x128xf32> to vector<16x128xf32>
    %12 = arith.addf %9, %11 : vector<16x128xf32>
    %cst_11 = arith.constant 0.000000e+00 : f32
    %13 = vector.broadcast %cst_11 : f32 to vector<16x128xf32>
    %14 = arith.maximumf %12, %13 : vector<16x128xf32>
    %c0_12 = arith.constant 0 : index
    %c0_13 = arith.constant 0 : index
    %15 = vector.load %arg7[%c0_12, %c0_13] : memref<128x256xf32, #tpu.memory_space<vmem>>, vector<128x256xf32>
    %cst_14 = arith.constant dense<0.000000e+00> : vector<16x256xf32>
    %16 = tpu.matmul %14, %15, %cst_14 {dimension_numbers = #tpu.dot_dimension_numbers<[1], [0], [0], [1], [0, 0, 1, 1], [], []>} : vector<16x128xf32>, vector<128x256xf32>, vector<16x256xf32> -> vector<16x256xf32>
    %c0_15 = arith.constant 0 : index
    %c0_16 = arith.constant 0 : index
    %17 = vector.load %arg8[%c0_15, %c0_16] : memref<1x256xf32, #tpu.memory_space<vmem>>, vector<1x256xf32>
    %18 = vector.broadcast %17 : vector<1x256xf32> to vector<16x256xf32>
    %19 = arith.addf %16, %18 : vector<16x256xf32>
    %20 = vector.extract_strided_slice %19 {offsets = [0, 0], sizes = [16, 128], strides = [1, 1]} : vector<16x256xf32> to vector<16x128xf32>
    %21 = vector.extract_strided_slice %19 {offsets = [0, 128], sizes = [16, 128], strides = [1, 1]} : vector<16x256xf32> to vector<16x128xf32>
    %cst_17 = arith.constant 5.000000e-01 : f32
    %22 = vector.broadcast %cst_17 : f32 to vector<16x128xf32>
    %23 = arith.mulf %22, %21 : vector<16x128xf32>
    %24 = math.exp %23 : vector<16x128xf32>
    %c0_18 = arith.constant 0 : index
    %c0_19 = arith.constant 0 : index
    %25 = vector.load %arg2[%c0_18, %c0_19] : memref<16x128xf32, #tpu.memory_space<vmem>>, vector<16x128xf32>
    %26 = arith.mulf %25, %24 : vector<16x128xf32>
    %27 = arith.addf %20, %26 : vector<16x128xf32>
    %c0_20 = arith.constant 0 : index
    %c0_21 = arith.constant 0 : index
    %28 = vector.load %arg9[%c0_20, %c0_21] : memref<128x128xf32, #tpu.memory_space<vmem>>, vector<128x128xf32>
    %cst_22 = arith.constant dense<0.000000e+00> : vector<16x128xf32>
    %29 = tpu.matmul %27, %28, %cst_22 {dimension_numbers = #tpu.dot_dimension_numbers<[1], [0], [0], [1], [0, 0, 1, 1], [], []>} : vector<16x128xf32>, vector<128x128xf32>, vector<16x128xf32> -> vector<16x128xf32>
    %c0_23 = arith.constant 0 : index
    %c0_24 = arith.constant 0 : index
    %30 = vector.load %arg10[%c0_23, %c0_24] : memref<1x128xf32, #tpu.memory_space<vmem>>, vector<1x128xf32>
    %31 = vector.broadcast %30 : vector<1x128xf32> to vector<16x128xf32>
    %32 = arith.addf %29, %31 : vector<16x128xf32>
    %cst_25 = arith.constant 0.000000e+00 : f32
    %33 = vector.broadcast %cst_25 : f32 to vector<16x128xf32>
    %34 = arith.maximumf %32, %33 : vector<16x128xf32>
    %c0_26 = arith.constant 0 : index
    %c0_27 = arith.constant 0 : index
    %35 = vector.load %arg11[%c0_26, %c0_27] : memref<128x128xf32, #tpu.memory_space<vmem>>, vector<128x128xf32>
    %cst_28 = arith.constant dense<0.000000e+00> : vector<16x128xf32>
    %36 = tpu.matmul %34, %35, %cst_28 {dimension_numbers = #tpu.dot_dimension_numbers<[1], [0], [0], [1], [0, 0, 1, 1], [], []>} : vector<16x128xf32>, vector<128x128xf32>, vector<16x128xf32> -> vector<16x128xf32>
    %c0_29 = arith.constant 0 : index
    %c0_30 = arith.constant 0 : index
    %37 = vector.load %arg12[%c0_29, %c0_30] : memref<1x128xf32, #tpu.memory_space<vmem>>, vector<1x128xf32>
    %38 = vector.broadcast %37 : vector<1x128xf32> to vector<16x128xf32>
    %39 = arith.addf %36, %38 : vector<16x128xf32>
    %cst_31 = arith.constant 0.000000e+00 : f32
    %40 = vector.broadcast %cst_31 : f32 to vector<16x128xf32>
    %41 = arith.maximumf %39, %40 : vector<16x128xf32>
    %c0_32 = arith.constant 0 : index
    %c0_33 = arith.constant 0 : index
    %42 = vector.load %arg13[%c0_32, %c0_33] : memref<128x128xf32, #tpu.memory_space<vmem>>, vector<128x128xf32>
    %cst_34 = arith.constant dense<0.000000e+00> : vector<16x128xf32>
    %43 = tpu.matmul %41, %42, %cst_34 {dimension_numbers = #tpu.dot_dimension_numbers<[1], [0], [0], [1], [0, 0, 1, 1], [], []>} : vector<16x128xf32>, vector<128x128xf32>, vector<16x128xf32> -> vector<16x128xf32>
    %c0_35 = arith.constant 0 : index
    %c0_36 = arith.constant 0 : index
    %44 = vector.load %arg14[%c0_35, %c0_36] : memref<1x128xf32, #tpu.memory_space<vmem>>, vector<1x128xf32>
    %45 = vector.broadcast %44 : vector<1x128xf32> to vector<16x128xf32>
    %46 = arith.addf %43, %45 : vector<16x128xf32>
    %c0_37 = arith.constant 0 : index
    %c0_38 = arith.constant 0 : index
    %47 = vector.load %arg15[%c0_37, %c0_38] : memref<16x128xf32, #tpu.memory_space<vmem>>, vector<16x128xf32>
    tpu.vector_store %arg15[%c0_37, %c0_38], %46 {strides = array<i32>} : memref<16x128xf32, #tpu.memory_space<vmem>>, vector<16x128xf32>,
    %c0_39 = arith.constant 0 : index
    %c0_40 = arith.constant 0 : index
    %48 = vector.load %arg16[%c0_39, %c0_40] : memref<16x256xf32, #tpu.memory_space<vmem>>, vector<16x256xf32>
    tpu.vector_store %arg16[%c0_39, %c0_40], %19 {strides = array<i32>} : memref<16x256xf32, #tpu.memory_space<vmem>>, vector<16x256xf32>,
    return
  }
  func.func @transform_0(%arg0: i32) -> (i32, i32) {
    %c0_i32 = arith.constant 0 : i32
    %c0_i32_0 = arith.constant 0 : i32
    return %arg0, %c0_i32 : i32, i32
  }
  func.func @transform_1(%arg0: i32) -> (i32, i32) {
    %c0_i32 = arith.constant 0 : i32
    %c0_i32_0 = arith.constant 0 : i32
    return %arg0, %c0_i32 : i32, i32
  }
  func.func @transform_2(%arg0: i32) -> (i32, i32) {
    %c0_i32 = arith.constant 0 : i32
    %c0_i32_0 = arith.constant 0 : i32
    %c0_i32_1 = arith.constant 0 : i32
    return %c0_i32, %c0_i32_0 : i32, i32
  }
  func.func @transform_3(%arg0: i32) -> (i32, i32) {
    %c0_i32 = arith.constant 0 : i32
    %c0_i32_0 = arith.constant 0 : i32
    %c0_i32_1 = arith.constant 0 : i32
    return %c0_i32, %c0_i32_0 : i32, i32
  }
  func.func @transform_4(%arg0: i32) -> (i32, i32) {
    %c0_i32 = arith.constant 0 : i32
    %c0_i32_0 = arith.constant 0 : i32
    %c0_i32_1 = arith.constant 0 : i32
    return %c0_i32, %c0_i32_0 : i32, i32
  }
  func.func @transform_5(%arg0: i32) -> (i32, i32) {
    %c0_i32 = arith.constant 0 : i32
    %c0_i32_0 = arith.constant 0 : i32
    %c0_i32_1 = arith.constant 0 : i32
    return %c0_i32, %c0_i32_0 : i32, i32
  }
  func.func @transform_6(%arg0: i32) -> (i32, i32) {
    %c0_i32 = arith.constant 0 : i32
    %c0_i32_0 = arith.constant 0 : i32
    %c0_i32_1 = arith.constant 0 : i32
    return %c0_i32, %c0_i32_0 : i32, i32
  }
  func.func @transform_7(%arg0: i32) -> (i32, i32) {
    %c0_i32 = arith.constant 0 : i32
    %c0_i32_0 = arith.constant 0 : i32
    %c0_i32_1 = arith.constant 0 : i32
    return %c0_i32, %c0_i32_0 : i32, i32
  }
  func.func @transform_8(%arg0: i32) -> (i32, i32) {
    %c0_i32 = arith.constant 0 : i32
    %c0_i32_0 = arith.constant 0 : i32
    %c0_i32_1 = arith.constant 0 : i32
    return %c0_i32, %c0_i32_0 : i32, i32
  }
  func.func @transform_9(%arg0: i32) -> (i32, i32) {
    %c0_i32 = arith.constant 0 : i32
    %c0_i32_0 = arith.constant 0 : i32
    %c0_i32_1 = arith.constant 0 : i32
    return %c0_i32, %c0_i32_0 : i32, i32
  }
  func.func @transform_10(%arg0: i32) -> (i32, i32) {
    %c0_i32 = arith.constant 0 : i32
    %c0_i32_0 = arith.constant 0 : i32
    %c0_i32_1 = arith.constant 0 : i32
    return %c0_i32, %c0_i32_0 : i32, i32
  }
  func.func @transform_11(%arg0: i32) -> (i32, i32) {
    %c0_i32 = arith.constant 0 : i32
    %c0_i32_0 = arith.constant 0 : i32
    %c0_i32_1 = arith.constant 0 : i32
    return %c0_i32, %c0_i32_0 : i32, i32
  }
  func.func @transform_12(%arg0: i32) -> (i32, i32) {
    %c0_i32 = arith.constant 0 : i32
    %c0_i32_0 = arith.constant 0 : i32
    %c0_i32_1 = arith.constant 0 : i32
    return %c0_i32, %c0_i32_0 : i32, i32
  }
  func.func @transform_13(%arg0: i32) -> (i32, i32) {
    %c0_i32 = arith.constant 0 : i32
    %c0_i32_0 = arith.constant 0 : i32
    %c0_i32_1 = arith.constant 0 : i32
    return %c0_i32, %c0_i32_0 : i32, i32
  }
  func.func @transform_14(%arg0: i32) -> (i32, i32) {
    %c0_i32 = arith.constant 0 : i32
    %c0_i32_0 = arith.constant 0 : i32
    return %arg0, %c0_i32 : i32, i32
  }
  func.func @transform_15(%arg0: i32) -> (i32, i32) {
    %c0_i32 = arith.constant 0 : i32
    %c0_i32_0 = arith.constant 0 : i32
    return %arg0, %c0_i32 : i32, i32
  }
}

</mosaic_0001>

<llo_original>
// kernel: vae_forward.1
$region0: #{vae_forward.1}
  #allocation0 [shape = 'u32[]', space=smem, size = 0x4, offset = 0x4, fixed_abs, tag = 'smem constant byte address 0x4 - core index']
  #allocation1 [shape = 'u32[144,128]{1,0:T(1,128)}', space=vmem, size = 0x12000, scoped, tag = 'internal scratch']
  %s0 = inlined_call_operand.vmem [shape: f32[16,128], index: 0, kind: input, shape index: {}]
  %s1 = inlined_call_operand.vmem [shape: f32[16,128], index: 1, kind: input, shape index: {}]
  %s2 = inlined_call_operand.vmem [shape: f32[128,128], index: 2, kind: input, shape index: {}]
  %s3 = inlined_call_operand.vmem [shape: f32[1,128], index: 3, kind: input, shape index: {}]
  %s4 = inlined_call_operand.vmem [shape: f32[128,128], index: 4, kind: input, shape index: {}]
  %s5 = inlined_call_operand.vmem [shape: f32[1,128], index: 5, kind: input, shape index: {}]
  %s6 = inlined_call_operand.vmem [shape: f32[128,256], index: 6, kind: input, shape index: {}]
  %s7 = inlined_call_operand.vmem [shape: f32[1,256], index: 7, kind: input, shape index: {}]
  %s8 = inlined_call_operand.vmem [shape: f32[128,128], index: 8, kind: input, shape index: {}]
  %s9 = inlined_call_operand.vmem [shape: f32[1,128], index: 9, kind: input, shape index: {}]
  %s10 = inlined_call_operand.vmem [shape: f32[128,128], index: 10, kind: input, shape index: {}]
  %s11 = inlined_call_operand.vmem [shape: f32[1,128], index: 11, kind: input, shape index: {}]
  %s12 = inlined_call_operand.vmem [shape: f32[128,128], index: 12, kind: input, shape index: {}]
  %s13 = inlined_call_operand.vmem [shape: f32[1,128], index: 13, kind: input, shape index: {}]
  %s14 = inlined_call_operand.hbm [shape: f32[16,128], index: 14, kind: output, shape index: {0}]
  %s15 = inlined_call_operand.vmem [shape: f32[16,256], index: 15, kind: output, shape index: {1}]
  %16 = xla_tuple %s14, %s15
  %s17 = sld [smem:[#allocation0]]
  $region74: #{vae_forward.1} parent=0
    _
  %s19 = ssub.s32 1, %s17
  %s20 = scalar_select 0, %s19, %s17
  $region1: #{vae_forward.1} parent=0
    #allocation2 [shape = 'u8[8192]{0}', space=vmem, size = 0x2000, scoped, tag = 'output window, operand 0, single buffered']
    #allocation3 [shape = 's32[1]{0}', space=sflag, size = 0x4, scoped, tag = 'scoped memory for vae_forward.1']
    %21 = vsyncpa [#allocation3], 0
    // Predicated region
    $region2: #{vae_forward.1} parent=1 // pred_check
      _
    $region3: #{vae_forward.1} parent=1 // pred_check_branch
      %23 = sbr.rel (0) target = $region5
    $region4: #{vae_forward.1} parent=1 // pred_region
      _
    $region5: #{vae_forward.1} parent=1 // pred_fallthru
      _
    // Predicated region
    $region6: #{vae_forward.1} parent=1 // pred_check
      _
    $region7: #{vae_forward.1} parent=1 // pred_check_branch
      %25 = sbr.rel (0) target = $region9
    $region8: #{vae_forward.1} parent=1 // pred_region
      _
    $region9: #{vae_forward.1} parent=1 // pred_fallthru
      _
    // Predicated region
    $region10: #{vae_forward.1} parent=1 // pred_check
      _
    $region11: #{vae_forward.1} parent=1 // pred_check_branch
      %27 = sbr.rel (0) target = $region13
    $region12: #{vae_forward.1} parent=1 // pred_region
      _
    $region13: #{vae_forward.1} parent=1 // pred_fallthru
      _
    // Predicated region
    $region14: #{vae_forward.1} parent=1 // pred_check
      _
    $region15: #{vae_forward.1} parent=1 // pred_check_branch
      %29 = sbr.rel (0) target = $region17
    $region16: #{vae_forward.1} parent=1 // pred_region
      _
    $region17: #{vae_forward.1} parent=1 // pred_fallthru
      _
    // Predicated region
    $region18: #{vae_forward.1} parent=1 // pred_check
      _
    $region19: #{vae_forward.1} parent=1 // pred_check_branch
      %31 = sbr.rel (0) target = $region21
    $region20: #{vae_forward.1} parent=1 // pred_region
      _
    $region21: #{vae_forward.1} parent=1 // pred_fallthru
      _
    // Predicated region
    $region22: #{vae_forward.1} parent=1 // pred_check
      _
    $region23: #{vae_forward.1} parent=1 // pred_check_branch
      %33 = sbr.rel (0) target = $region25
    $region24: #{vae_forward.1} parent=1 // pred_region
      _
    $region25: #{vae_forward.1} parent=1 // pred_fallthru
      _
    // Predicated region
    $region26: #{vae_forward.1} parent=1 // pred_check
      _
    $region27: #{vae_forward.1} parent=1 // pred_check_branch
      %35 = sbr.rel (0) target = $region29
    $region28: #{vae_forward.1} parent=1 // pred_region
      _
    $region29: #{vae_forward.1} parent=1 // pred_fallthru
      _
    // Predicated region
    $region30: #{vae_forward.1} parent=1 // pred_check
      _
    $region31: #{vae_forward.1} parent=1 // pred_check_branch
      %37 = sbr.rel (0) target = $region33
    $region32: #{vae_forward.1} parent=1 // pred_region
      _
    $region33: #{vae_forward.1} parent=1 // pred_fallthru
      _
    // Predicated region
    $region34: #{vae_forward.1} parent=1 // pred_check
      _
    $region35: #{vae_forward.1} parent=1 // pred_check_branch
      %39 = sbr.rel (0) target = $region37
    $region36: #{vae_forward.1} parent=1 // pred_region
      _
    $region37: #{vae_forward.1} parent=1 // pred_fallthru
      _
    // Predicated region
    $region38: #{vae_forward.1} parent=1 // pred_check
      _
    $region39: #{vae_forward.1} parent=1 // pred_check_branch
      %41 = sbr.rel (0) target = $region41
    $region40: #{vae_forward.1} parent=1 // pred_region
      _
    $region41: #{vae_forward.1} parent=1 // pred_fallthru
      _
    // Predicated region
    $region42: #{vae_forward.1} parent=1 // pred_check
      _
    $region43: #{vae_forward.1} parent=1 // pred_check_branch
      %43 = sbr.rel (0) target = $region45
    $region44: #{vae_forward.1} parent=1 // pred_region
      _
    $region45: #{vae_forward.1} parent=1 // pred_fallthru
      _
    // Predicated region
    $region46: #{vae_forward.1} parent=1 // pred_check
      _
    $region47: #{vae_forward.1} parent=1 // pred_check_branch
      %45 = sbr.rel (0) target = $region49
    $region48: #{vae_forward.1} parent=1 // pred_region
      _
    $region49: #{vae_forward.1} parent=1 // pred_fallthru
      _
    // Predicated region
    $region50: #{vae_forward.1} parent=1 // pred_check
      _
    $region51: #{vae_forward.1} parent=1 // pred_check_branch
      %47 = sbr.rel (0) target = $region53
    $region52: #{vae_forward.1} parent=1 // pred_region
      _
    $region53: #{vae_forward.1} parent=1 // pred_fallthru
      _
    // Predicated region
    $region54: #{vae_forward.1} parent=1 // pred_check
      _
    $region55: #{vae_forward.1} parent=1 // pred_check_branch
      %49 = sbr.rel (0) target = $region57
    $region56: #{vae_forward.1} parent=1 // pred_region
      _
    $region57: #{vae_forward.1} parent=1 // pred_fallthru
      _
    %v50 = vld [vmem:[%s0] sm:$0xff]
    %v51 = vld [vmem:[%s0 + $0x8] sm:$0xff]
    %v52 = vld [vmem:[%s2] sm:$0xff]
    %v53 = vld [vmem:[%s2 + $0x8] sm:$0xff]
    %v54 = vld [vmem:[%s2 + $0x10] sm:$0xff]
    %v55 = vld [vmem:[%s2 + $0x18] sm:$0xff]
    %v56 = vld [vmem:[%s2 + $0x20] sm:$0xff]
    %v57 = vld [vmem:[%s2 + $0x28] sm:$0xff]
    %v58 = vld [vmem:[%s2 + $0x30] sm:$0xff]
    %v59 = vld [vmem:[%s2 + $0x38] sm:$0xff]
    %v60 = vld [vmem:[%s2 + $0x40] sm:$0xff]
    %v61 = vld [vmem:[%s2 + $0x48] sm:$0xff]
    %v62 = vld [vmem:[%s2 + $0x50] sm:$0xff]
    %v63 = vld [vmem:[%s2 + $0x58] sm:$0xff]
    %v64 = vld [vmem:[%s2 + $0x60] sm:$0xff]
    %v65 = vld [vmem:[%s2 + $0x68] sm:$0xff]
    %v66 = vld [vmem:[%s2 + $0x70] sm:$0xff]
    %v67 = vld [vmem:[%s2 + $0x78] sm:$0xff]
    %v68 = vld [vmem:[%s3] sm:$0x1]
    %v70 = vlaneseq
    %v71 = vshrl.u32 %v70, 7
    %v72 = vsub.s32 0, %v71
    %v73 = vrot.slane %v68, %v72
    %75 = vmatprep.subr.mxu0 0.0
    %76 = vmatpush1.msra.mxu0 %v67
    %77 = vmatprep.subr.mxu0 0.0
    %78 = vmatpush1.msra.mxu0 %v66
    %79 = vmatprep.subr.mxu0 0.0
    %80 = vmatpush1.msra.mxu0 %v65
    %81 = vmatprep.subr.mxu0 0.0
    %82 = vmatpush1.msra.mxu0 %v64
    %83 = vmatprep.subr.mxu0 0.0
    %84 = vmatpush1.msra.mxu0 %v63
    %85 = vmatprep.subr.mxu0 0.0
    %86 = vmatpush1.msra.mxu0 %v62
    %87 = vmatprep.subr.mxu0 0.0
    %88 = vmatpush1.msra.mxu0 %v61
    %89 = vmatprep.subr.mxu0 0.0
    %90 = vmatpush1.msra.mxu0 %v60
    %91 = vmatprep.subr.mxu0 0.0
    %92 = vmatpush1.msra.mxu0 %v59
    %93 = vmatprep.subr.mxu0 0.0
    %94 = vmatpush1.msra.mxu0 %v58
    %95 = vmatprep.subr.mxu0 0.0
    %96 = vmatpush1.msra.mxu0 %v57
    %97 = vmatprep.subr.mxu0 0.0
    %98 = vmatpush1.msra.mxu0 %v56
    %99 = vmatprep.subr.mxu0 0.0
    %100 = vmatpush1.msra.mxu0 %v55
    %101 = vmatprep.subr.mxu0 0.0
    %102 = vmatpush1.msra.mxu0 %v54
    %103 = vmatprep.subr.mxu0 0.0
    %104 = vmatpush1.msra.mxu0 %v53
    %105 = vmatprep.subr.mxu0 0.0
    %106 = vmatpush1.msra.mxu0 %v52
    %107 = vmatprep.subr.mxu0 0.0
    %108 = vmatpush2.msra.mxu0 0.0
    %109 = vmatprep.subr.mxu0 0.0
    %110 = vmatpush2.msra.mxu0 0.0
    %111 = vmatprep.subr.mxu0 0.0
    %112 = vmatpush2.msra.mxu0 0.0
    %113 = vmatprep.subr.mxu0 0.0
    %114 = vmatpush2.msra.mxu0 0.0
    %115 = vmatprep.subr.mxu0 0.0
    %116 = vmatpush2.msra.mxu0 0.0
    %117 = vmatprep.subr.mxu0 0.0
    %118 = vmatpush2.msra.mxu0 0.0
    %119 = vmatprep.subr.mxu0 0.0
    %120 = vmatpush2.msra.mxu0 0.0
    %121 = vmatprep.subr.mxu0 0.0
    %122 = vmatpush2.msra.mxu0 0.0
    %123 = vmatprep.subr.mxu0 0.0
    %124 = vmatpush2.msra.mxu0 0.0
    %125 = vmatprep.subr.mxu0 0.0
    %126 = vmatpush2.msra.mxu0 0.0
    %127 = vmatprep.subr.mxu0 0.0
    %128 = vmatpush2.msra.mxu0 0.0
    %129 = vmatprep.subr.mxu0 0.0
    %130 = vmatpush2.msra.mxu0 0.0
    %131 = vmatprep.subr.mxu0 0.0
    %132 = vmatpush2.msra.mxu0 0.0
    %133 = vmatprep.subr.mxu0 0.0
    %134 = vmatpush2.msra.mxu0 0.0
    %135 = vmatprep.subr.mxu0 0.0
    %136 = vmatpush2.msra.mxu0 0.0
    %137 = vmatprep.subr.mxu0 0.0
    %138 = vmatpush2.msra.mxu0 0.0
    %139 = vmatprep.mubr.f32.mxu0 0.0
    %140 = vmatmul.mubr.f32.gmra.mxu0 %v50
    %v141 = vpop.f32.mrf.mxu0
    %v142 = vadd.f32 %v73, %v141
    %v143 = vpop.f32.mrf.mxu0
    %144 = vmatprep.mubr.f32.mxu0 0.0
    %145 = vmatmul.mubr.f32.gmra.mxu0 %v51
    %v146 = vpop.f32.mrf.mxu0
    %v147 = vadd.f32 %v73, %v146
    %v148 = vpop.f32.mrf.mxu0
    %149 = vdwg.mxu0
    %v150 = vmax.f32 %v142, 0.0
    %v151 = vmax.f32 %v147, 0.0
    %v152 = vld [vmem:[%s4] sm:$0xff]
    %v153 = vld [vmem:[%s4 + $0x8] sm:$0xff]
    %v154 = vld [vmem:[%s4 + $0x10] sm:$0xff]
    %v155 = vld [vmem:[%s4 + $0x18] sm:$0xff]
    %v156 = vld [vmem:[%s4 + $0x20] sm:$0xff]
    %v157 = vld [vmem:[%s4 + $0x28] sm:$0xff]
    %v158 = vld [vmem:[%s4 + $0x30] sm:$0xff]
    %v159 = vld [vmem:[%s4 + $0x38] sm:$0xff]
    %v160 = vld [vmem:[%s4 + $0x40] sm:$0xff]
    %v161 = vld [vmem:[%s4 + $0x48] sm:$0xff]
    %v162 = vld [vmem:[%s4 + $0x50] sm:$0xff]
    %v163 = vld [vmem:[%s4 + $0x58] sm:$0xff]
    %v164 = vld [vmem:[%s4 + $0x60] sm:$0xff]
    %v165 = vld [vmem:[%s4 + $0x68] sm:$0xff]
    %v166 = vld [vmem:[%s4 + $0x70] sm:$0xff]
    %v167 = vld [vmem:[%s4 + $0x78] sm:$0xff]
    %v168 = vld [vmem:[%s5] sm:$0x1]
    %v170 = vlaneseq
    %v171 = vshrl.u32 %v170, 7
    %v172 = vsub.s32 0, %v171
    %v173 = vrot.slane %v168, %v172
    %175 = vmatprep.subr.mxu0 0.0
    %176 = vmatpush1.msra.mxu0 %v167
    %177 = vmatprep.subr.mxu0 0.0
    %178 = vmatpush1.msra.mxu0 %v166
    %179 = vmatprep.subr.mxu0 0.0
    %180 = vmatpush1.msra.mxu0 %v165
    %181 = vmatprep.subr.mxu0 0.0
    %182 = vmatpush1.msra.mxu0 %v164
    %183 = vmatprep.subr.mxu0 0.0
    %184 = vmatpush1.msra.mxu0 %v163
    %185 = vmatprep.subr.mxu0 0.0
    %186 = vmatpush1.msra.mxu0 %v162
    %187 = vmatprep.subr.mxu0 0.0
    %188 = vmatpush1.msra.mxu0 %v161
    %189 = vmatprep.subr.mxu0 0.0
    %190 = vmatpush1.msra.mxu0 %v160
    %191 = vmatprep.subr.mxu0 0.0
    %192 = vmatpush1.msra.mxu0 %v159
    %193 = vmatprep.subr.mxu0 0.0
    %194 = vmatpush1.msra.mxu0 %v158
    %195 = vmatprep.subr.mxu0 0.0
    %196 = vmatpush1.msra.mxu0 %v157
    %197 = vmatprep.subr.mxu0 0.0
    %198 = vmatpush1.msra.mxu0 %v156
    %199 = vmatprep.subr.mxu0 0.0
    %200 = vmatpush1.msra.mxu0 %v155
    %201 = vmatprep.subr.mxu0 0.0
    %202 = vmatpush1.msra.mxu0 %v154
    %203 = vmatprep.subr.mxu0 0.0
    %204 = vmatpush1.msra.mxu0 %v153
    %205 = vmatprep.subr.mxu0 0.0
    %206 = vmatpush1.msra.mxu0 %v152
    %207 = vmatprep.subr.mxu0 0.0
    %208 = vmatpush2.msra.mxu0 0.0
    %209 = vmatprep.subr.mxu0 0.0
    %210 = vmatpush2.msra.mxu0 0.0
    %211 = vmatprep.subr.mxu0 0.0
    %212 = vmatpush2.msra.mxu0 0.0
    %213 = vmatprep.subr.mxu0 0.0
    %214 = vmatpush2.msra.mxu0 0.0
    %215 = vmatprep.subr.mxu0 0.0
    %216 = vmatpush2.msra.mxu0 0.0
    %217 = vmatprep.subr.mxu0 0.0
    %218 = vmatpush2.msra.mxu0 0.0
    %219 = vmatprep.subr.mxu0 0.0
    %220 = vmatpush2.msra.mxu0 0.0
    %221 = vmatprep.subr.mxu0 0.0
    %222 = vmatpush2.msra.mxu0 0.0
    %223 = vmatprep.subr.mxu0 0.0
    %224 = vmatpush2.msra.mxu0 0.0
    %225 = vmatprep.subr.mxu0 0.0
    %226 = vmatpush2.msra.mxu0 0.0
    %227 = vmatprep.subr.mxu0 0.0
    %228 = vmatpush2.msra.mxu0 0.0
    %229 = vmatprep.subr.mxu0 0.0
    %230 = vmatpush2.msra.mxu0 0.0
    %231 = vmatprep.subr.mxu0 0.0
    %232 = vmatpush2.msra.mxu0 0.0
    %233 = vmatprep.subr.mxu0 0.0
    %234 = vmatpush2.msra.mxu0 0.0
    %235 = vmatprep.subr.mxu0 0.0
    %236 = vmatpush2.msra.mxu0 0.0
    %237 = vmatprep.subr.mxu0 0.0
    %238 = vmatpush2.msra.mxu0 0.0
    %239 = vmatprep.mubr.f32.mxu0 0.0
    %240 = vmatmul.mubr.f32.gmra.mxu0 %v150
    %v241 = vpop.f32.mrf.mxu0
    %v242 = vadd.f32 %v173, %v241
    %v243 = vpop.f32.mrf.mxu0
    %244 = vmatprep.mubr.f32.mxu0 0.0
    %245 = vmatmul.mubr.f32.gmra.mxu0 %v151
    %v246 = vpop.f32.mrf.mxu0
    %v247 = vadd.f32 %v173, %v246
    %v248 = vpop.f32.mrf.mxu0
    %249 = vdwg.mxu0
    %v250 = vmax.f32 %v242, 0.0
    %v251 = vmax.f32 %v247, 0.0
    %v252 = vld [vmem:[%s6] sm:$0xff]
    %v253 = vld [vmem:[%s6 + $0x8] sm:$0xff]
    %v254 = vld [vmem:[%s6 + $0x10] sm:$0xff]
    %v255 = vld [vmem:[%s6 + $0x18] sm:$0xff]
    %v256 = vld [vmem:[%s6 + $0x20] sm:$0xff]
    %v257 = vld [vmem:[%s6 + $0x28] sm:$0xff]
    %v258 = vld [vmem:[%s6 + $0x30] sm:$0xff]
    %v259 = vld [vmem:[%s6 + $0x38] sm:$0xff]
    %v260 = vld [vmem:[%s6 + $0x40] sm:$0xff]
    %v261 = vld [vmem:[%s6 + $0x48] sm:$0xff]
    %v262 = vld [vmem:[%s6 + $0x50] sm:$0xff]
    %v263 = vld [vmem:[%s6 + $0x58] sm:$0xff]
    %v264 = vld [vmem:[%s6 + $0x60] sm:$0xff]
    %v265 = vld [vmem:[%s6 + $0x68] sm:$0xff]
    %v266 = vld [vmem:[%s6 + $0x70] sm:$0xff]
    %v267 = vld [vmem:[%s6 + $0x78] sm:$0xff]
    %v268 = vld [vmem:[%s6 + $0x80] sm:$0xff]
    %v269 = vld [vmem:[%s6 + $0x88] sm:$0xff]
    %v270 = vld [vmem:[%s6 + $0x90] sm:$0xff]
    %v271 = vld [vmem:[%s6 + $0x98] sm:$0xff]
    %v272 = vld [vmem:[%s6 + $0xa0] sm:$0xff]
    %v273 = vld [vmem:[%s6 + $0xa8] sm:$0xff]
    %v274 = vld [vmem:[%s6 + $0xb0] sm:$0xff]
    %v275 = vld [vmem:[%s6 + $0xb8] sm:$0xff]
    %v276 = vld [vmem:[%s6 + $0xc0] sm:$0xff]
    %v277 = vld [vmem:[%s6 + $0xc8] sm:$0xff]
    %v278 = vld [vmem:[%s6 + $0xd0] sm:$0xff]
    %v279 = vld [vmem:[%s6 + $0xd8] sm:$0xff]
    %v280 = vld [vmem:[%s6 + $0xe0] sm:$0xff]
    %v281 = vld [vmem:[%s6 + $0xe8] sm:$0xff]
    %v282 = vld [vmem:[%s6 + $0xf0] sm:$0xff]
    %v283 = vld [vmem:[%s6 + $0xf8] sm:$0xff]
    %v284 = vld [vmem:[%s7] sm:$0x3]
    %v286 = vlaneseq
    %v287 = vshrl.u32 %v286, 7
    %v288 = vsub.s32 0, %v287
    %v289 = vrot.slane %v284, %v288
    %v290 = vlaneseq
    %v291 = vshrl.u32 %v290, 7
    %v292 = vsub.s32 1, %v291
    %v293 = vrot.slane %v284, %v292
    %296 = vmatprep.subr.mxu0 %v283
    %297 = vmatpush1.msra.mxu0 %v282
    %298 = vmatprep.subr.mxu0 %v281
    %299 = vmatpush1.msra.mxu0 %v280
    %300 = vmatprep.subr.mxu0 %v279
    %301 = vmatpush1.msra.mxu0 %v278
    %302 = vmatprep.subr.mxu0 %v277
    %303 = vmatpush1.msra.mxu0 %v276
    %304 = vmatprep.subr.mxu0 %v275
    %305 = vmatpush1.msra.mxu0 %v274
    %306 = vmatprep.subr.mxu0 %v273
    %307 = vmatpush1.msra.mxu0 %v272
    %308 = vmatprep.subr.mxu0 %v271
    %309 = vmatpush1.msra.mxu0 %v270
    %310 = vmatprep.subr.mxu0 %v269
    %311 = vmatpush1.msra.mxu0 %v268
    %312 = vmatprep.subr.mxu0 %v267
    %313 = vmatpush1.msra.mxu0 %v266
    %314 = vmatprep.subr.mxu0 %v265
    %315 = vmatpush1.msra.mxu0 %v264
    %316 = vmatprep.subr.mxu0 %v263
    %317 = vmatpush1.msra.mxu0 %v262
    %318 = vmatprep.subr.mxu0 %v261
    %319 = vmatpush1.msra.mxu0 %v260
    %320 = vmatprep.subr.mxu0 %v259
    %321 = vmatpush1.msra.mxu0 %v258
    %322 = vmatprep.subr.mxu0 %v257
    %323 = vmatpush1.msra.mxu0 %v256
    %324 = vmatprep.subr.mxu0 %v255
    %325 = vmatpush1.msra.mxu0 %v254
    %326 = vmatprep.subr.mxu0 %v253
    %327 = vmatpush1.msra.mxu0 %v252
    %328 = vmatprep.subr.mxu0 0.0
    %329 = vmatpush2.msra.mxu0 0.0
    %330 = vmatprep.subr.mxu0 0.0
    %331 = vmatpush2.msra.mxu0 0.0
    %332 = vmatprep.subr.mxu0 0.0
    %333 = vmatpush2.msra.mxu0 0.0
    %334 = vmatprep.subr.mxu0 0.0
    %335 = vmatpush2.msra.mxu0 0.0
    %336 = vmatprep.subr.mxu0 0.0
    %337 = vmatpush2.msra.mxu0 0.0
    %338 = vmatprep.subr.mxu0 0.0
    %339 = vmatpush2.msra.mxu0 0.0
    %340 = vmatprep.subr.mxu0 0.0
    %341 = vmatpush2.msra.mxu0 0.0
    %342 = vmatprep.subr.mxu0 0.0
    %343 = vmatpush2.msra.mxu0 0.0
    %344 = vmatprep.subr.mxu0 0.0
    %345 = vmatpush2.msra.mxu0 0.0
    %346 = vmatprep.subr.mxu0 0.0
    %347 = vmatpush2.msra.mxu0 0.0
    %348 = vmatprep.subr.mxu0 0.0
    %349 = vmatpush2.msra.mxu0 0.0
    %350 = vmatprep.subr.mxu0 0.0
    %351 = vmatpush2.msra.mxu0 0.0
    %352 = vmatprep.subr.mxu0 0.0
    %353 = vmatpush2.msra.mxu0 0.0
    %354 = vmatprep.subr.mxu0 0.0
    %355 = vmatpush2.msra.mxu0 0.0
    %356 = vmatprep.subr.mxu0 0.0
    %357 = vmatpush2.msra.mxu0 0.0
    %358 = vmatprep.subr.mxu0 0.0
    %359 = vmatpush2.msra.mxu0 0.0
    %360 = vmatprep.mubr.f32.mxu0 0.0
    %361 = vmatmul.mubr.f32.gmra.mxu0 %v250
    %v362 = vpop.f32.mrf.mxu0
    %v363 = vadd.f32 %v289, %v362
    %v364 = vpop.f32.mrf.mxu0
    %v365 = vadd.f32 %v293, %v364
    %366 = vmatprep.mubr.f32.mxu0 0.0
    %367 = vmatmul.mubr.f32.gmra.mxu0 %v251
    %v368 = vpop.f32.mrf.mxu0
    %v369 = vadd.f32 %v289, %v368
    %v370 = vpop.f32.mrf.mxu0
    %v371 = vadd.f32 %v293, %v370
    %372 = vdwg.mxu0
    %v373 = vmul.f32 %v365, 0.5
    %v374 = vmul.f32 %v371, 0.5
    %v375 = vmul.f32 %v373, 1.442695
    %v376 = vpow.pop %v375
    %v377 = vmul.f32 %v374, 1.442695
    %v378 = vpow.pop %v377
    %v379 = vld [vmem:[%s1] sm:$0xff]
    %v380 = vld [vmem:[%s1 + $0x8] sm:$0xff]
    %v381 = vmul.f32 %v379, %v376
    %v382 = vmul.f32 %v380, %v378
    %v383 = vadd.f32 %v363, %v381
    %v384 = vadd.f32 %v369, %v382
    %v385 = vld [vmem:[%s8] sm:$0xff]
    %v386 = vld [vmem:[%s8 + $0x8] sm:$0xff]
    %v387 = vld [vmem:[%s8 + $0x10] sm:$0xff]
    %v388 = vld [vmem:[%s8 + $0x18] sm:$0xff]
    %v389 = vld [vmem:[%s8 + $0x20] sm:$0xff]
    %v390 = vld [vmem:[%s8 + $0x28] sm:$0xff]
    %v391 = vld [vmem:[%s8 + $0x30] sm:$0xff]
    %v392 = vld [vmem:[%s8 + $0x38] sm:$0xff]
    %v393 = vld [vmem:[%s8 + $0x40] sm:$0xff]
    %v394 = vld [vmem:[%s8 + $0x48] sm:$0xff]
    %v395 = vld [vmem:[%s8 + $0x50] sm:$0xff]
    %v396 = vld [vmem:[%s8 + $0x58] sm:$0xff]
    %v397 = vld [vmem:[%s8 + $0x60] sm:$0xff]
    %v398 = vld [vmem:[%s8 + $0x68] sm:$0xff]
    %v399 = vld [vmem:[%s8 + $0x70] sm:$0xff]
    %v400 = vld [vmem:[%s8 + $0x78] sm:$0xff]
    %v401 = vld [vmem:[%s9] sm:$0x1]
    %v403 = vlaneseq
    %v404 = vshrl.u32 %v403, 7
    %v405 = vsub.s32 0, %v404
    %v406 = vrot.slane %v401, %v405
    %408 = vmatprep.subr.mxu0 0.0
    %409 = vmatpush1.msra.mxu0 %v400
    %410 = vmatprep.subr.mxu0 0.0
    %411 = vmatpush1.msra.mxu0 %v399
    %412 = vmatprep.subr.mxu0 0.0
    %413 = vmatpush1.msra.mxu0 %v398
    %414 = vmatprep.subr.mxu0 0.0
    %415 = vmatpush1.msra.mxu0 %v397
    %416 = vmatprep.subr.mxu0 0.0
    %417 = vmatpush1.msra.mxu0 %v396
    %418 = vmatprep.subr.mxu0 0.0
    %419 = vmatpush1.msra.mxu0 %v395
    %420 = vmatprep.subr.mxu0 0.0
    %421 = vmatpush1.msra.mxu0 %v394
    %422 = vmatprep.subr.mxu0 0.0
    %423 = vmatpush1.msra.mxu0 %v393
    %424 = vmatprep.subr.mxu0 0.0
    %425 = vmatpush1.msra.mxu0 %v392
    %426 = vmatprep.subr.mxu0 0.0
    %427 = vmatpush1.msra.mxu0 %v391
    %428 = vmatprep.subr.mxu0 0.0
    %429 = vmatpush1.msra.mxu0 %v390
    %430 = vmatprep.subr.mxu0 0.0
    %431 = vmatpush1.msra.mxu0 %v389
    %432 = vmatprep.subr.mxu0 0.0
    %433 = vmatpush1.msra.mxu0 %v388
    %434 = vmatprep.subr.mxu0 0.0
    %435 = vmatpush1.msra.mxu0 %v387
    %436 = vmatprep.subr.mxu0 0.0
    %437 = vmatpush1.msra.mxu0 %v386
    %438 = vmatprep.subr.mxu0 0.0
    %439 = vmatpush1.msra.mxu0 %v385
    %440 = vmatprep.subr.mxu0 0.0
    %441 = vmatpush2.msra.mxu0 0.0
    %442 = vmatprep.subr.mxu0 0.0
    %443 = vmatpush2.msra.mxu0 0.0
    %444 = vmatprep.subr.mxu0 0.0
    %445 = vmatpush2.msra.mxu0 0.0
    %446 = vmatprep.subr.mxu0 0.0
    %447 = vmatpush2.msra.mxu0 0.0
    %448 = vmatprep.subr.mxu0 0.0
    %449 = vmatpush2.msra.mxu0 0.0
    %450 = vmatprep.subr.mxu0 0.0
    %451 = vmatpush2.msra.mxu0 0.0
    %452 = vmatprep.subr.mxu0 0.0
    %453 = vmatpush2.msra.mxu0 0.0
    %454 = vmatprep.subr.mxu0 0.0
    %455 = vmatpush2.msra.mxu0 0.0
    %456 = vmatprep.subr.mxu0 0.0
    %457 = vmatpush2.msra.mxu0 0.0
    %458 = vmatprep.subr.mxu0 0.0
    %459 = vmatpush2.msra.mxu0 0.0
    %460 = vmatprep.subr.mxu0 0.0
    %461 = vmatpush2.msra.mxu0 0.0
    %462 = vmatprep.subr.mxu0 0.0
    %463 = vmatpush2.msra.mxu0 0.0
    %464 = vmatprep.subr.mxu0 0.0
    %465 = vmatpush2.msra.mxu0 0.0
    %466 = vmatprep.subr.mxu0 0.0
    %467 = vmatpush2.msra.mxu0 0.0
    %468 = vmatprep.subr.mxu0 0.0
    %469 = vmatpush2.msra.mxu0 0.0
    %470 = vmatprep.subr.mxu0 0.0
    %471 = vmatpush2.msra.mxu0 0.0
    %472 = vmatprep.mubr.f32.mxu0 0.0
    %473 = vmatmul.mubr.f32.gmra.mxu0 %v383
    %v474 = vpop.f32.mrf.mxu0
    %v475 = vadd.f32 %v406, %v474
    %v476 = vpop.f32.mrf.mxu0
    %477 = vmatprep.mubr.f32.mxu0 0.0
    %478 = vmatmul.mubr.f32.gmra.mxu0 %v384
    %v479 = vpop.f32.mrf.mxu0
    %v480 = vadd.f32 %v406, %v479
    %v481 = vpop.f32.mrf.mxu0
    %482 = vdwg.mxu0
    %v483 = vmax.f32 %v475, 0.0
    %v484 = vmax.f32 %v480, 0.0
    %v485 = vld [vmem:[%s10] sm:$0xff]
    %v486 = vld [vmem:[%s10 + $0x8] sm:$0xff]
    %v487 = vld [vmem:[%s10 + $0x10] sm:$0xff]
    %v488 = vld [vmem:[%s10 + $0x18] sm:$0xff]
    %v489 = vld [vmem:[%s10 + $0x20] sm:$0xff]
    %v490 = vld [vmem:[%s10 + $0x28] sm:$0xff]
    %v491 = vld [vmem:[%s10 + $0x30] sm:$0xff]
    %v492 = vld [vmem:[%s10 + $0x38] sm:$0xff]
    %v493 = vld [vmem:[%s10 + $0x40] sm:$0xff]
    %v494 = vld [vmem:[%s10 + $0x48] sm:$0xff]
    %v495 = vld [vmem:[%s10 + $0x50] sm:$0xff]
    %v496 = vld [vmem:[%s10 + $0x58] sm:$0xff]
    %v497 = vld [vmem:[%s10 + $0x60] sm:$0xff]
    %v498 = vld [vmem:[%s10 + $0x68] sm:$0xff]
    %v499 = vld [vmem:[%s10 + $0x70] sm:$0xff]
    %v500 = vld [vmem:[%s10 + $0x78] sm:$0xff]
    %v501 = vld [vmem:[%s11] sm:$0x1]
    %v503 = vlaneseq
    %v504 = vshrl.u32 %v503, 7
    %v505 = vsub.s32 0, %v504
    %v506 = vrot.slane %v501, %v505
    %508 = vmatprep.subr.mxu0 0.0
    %509 = vmatpush1.msra.mxu0 %v500
    %510 = vmatprep.subr.mxu0 0.0
    %511 = vmatpush1.msra.mxu0 %v499
    %512 = vmatprep.subr.mxu0 0.0
    %513 = vmatpush1.msra.mxu0 %v498
    %514 = vmatprep.subr.mxu0 0.0
    %515 = vmatpush1.msra.mxu0 %v497
    %516 = vmatprep.subr.mxu0 0.0
    %517 = vmatpush1.msra.mxu0 %v496
    %518 = vmatprep.subr.mxu0 0.0
    %519 = vmatpush1.msra.mxu0 %v495
    %520 = vmatprep.subr.mxu0 0.0
    %521 = vmatpush1.msra.mxu0 %v494
    %522 = vmatprep.subr.mxu0 0.0
    %523 = vmatpush1.msra.mxu0 %v493
    %524 = vmatprep.subr.mxu0 0.0
    %525 = vmatpush1.msra.mxu0 %v492
    %526 = vmatprep.subr.mxu0 0.0
    %527 = vmatpush1.msra.mxu0 %v491
    %528 = vmatprep.subr.mxu0 0.0
    %529 = vmatpush1.msra.mxu0 %v490
    %530 = vmatprep.subr.mxu0 0.0
    %531 = vmatpush1.msra.mxu0 %v489
    %532 = vmatprep.subr.mxu0 0.0
    %533 = vmatpush1.msra.mxu0 %v488
    %534 = vmatprep.subr.mxu0 0.0
    %535 = vmatpush1.msra.mxu0 %v487
    %536 = vmatprep.subr.mxu0 0.0
    %537 = vmatpush1.msra.mxu0 %v486
    %538 = vmatprep.subr.mxu0 0.0
    %539 = vmatpush1.msra.mxu0 %v485
    %540 = vmatprep.subr.mxu0 0.0
    %541 = vmatpush2.msra.mxu0 0.0
    %542 = vmatprep.subr.mxu0 0.0
    %543 = vmatpush2.msra.mxu0 0.0
    %544 = vmatprep.subr.mxu0 0.0
    %545 = vmatpush2.msra.mxu0 0.0
    %546 = vmatprep.subr.mxu0 0.0
    %547 = vmatpush2.msra.mxu0 0.0
    %548 = vmatprep.subr.mxu0 0.0
    %549 = vmatpush2.msra.mxu0 0.0
    %550 = vmatprep.subr.mxu0 0.0
    %551 = vmatpush2.msra.mxu0 0.0
    %552 = vmatprep.subr.mxu0 0.0
    %553 = vmatpush2.msra.mxu0 0.0
    %554 = vmatprep.subr.mxu0 0.0
    %555 = vmatpush2.msra.mxu0 0.0
    %556 = vmatprep.subr.mxu0 0.0
    %557 = vmatpush2.msra.mxu0 0.0
    %558 = vmatprep.subr.mxu0 0.0
    %559 = vmatpush2.msra.mxu0 0.0
    %560 = vmatprep.subr.mxu0 0.0
    %561 = vmatpush2.msra.mxu0 0.0
    %562 = vmatprep.subr.mxu0 0.0
    %563 = vmatpush2.msra.mxu0 0.0
    %564 = vmatprep.subr.mxu0 0.0
    %565 = vmatpush2.msra.mxu0 0.0
    %566 = vmatprep.subr.mxu0 0.0
    %567 = vmatpush2.msra.mxu0 0.0
    %568 = vmatprep.subr.mxu0 0.0
    %569 = vmatpush2.msra.mxu0 0.0
    %570 = vmatprep.subr.mxu0 0.0
    %571 = vmatpush2.msra.mxu0 0.0
    %572 = vmatprep.mubr.f32.mxu0 0.0
    %573 = vmatmul.mubr.f32.gmra.mxu0 %v483
    %v574 = vpop.f32.mrf.mxu0
    %v575 = vadd.f32 %v506, %v574
    %v576 = vpop.f32.mrf.mxu0
    %577 = vmatprep.mubr.f32.mxu0 0.0
    %578 = vmatmul.mubr.f32.gmra.mxu0 %v484
    %v579 = vpop.f32.mrf.mxu0
    %v580 = vadd.f32 %v506, %v579
    %v581 = vpop.f32.mrf.mxu0
    %582 = vdwg.mxu0
    %v583 = vmax.f32 %v575, 0.0
    %v584 = vmax.f32 %v580, 0.0
    %v585 = vld [vmem:[%s12] sm:$0xff]
    %v586 = vld [vmem:[%s12 + $0x8] sm:$0xff]
    %v587 = vld [vmem:[%s12 + $0x10] sm:$0xff]
    %v588 = vld [vmem:[%s12 + $0x18] sm:$0xff]
    %v589 = vld [vmem:[%s12 + $0x20] sm:$0xff]
    %v590 = vld [vmem:[%s12 + $0x28] sm:$0xff]
    %v591 = vld [vmem:[%s12 + $0x30] sm:$0xff]
    %v592 = vld [vmem:[%s12 + $0x38] sm:$0xff]
    %v593 = vld [vmem:[%s12 + $0x40] sm:$0xff]
    %v594 = vld [vmem:[%s12 + $0x48] sm:$0xff]
    %v595 = vld [vmem:[%s12 + $0x50] sm:$0xff]
    %v596 = vld [vmem:[%s12 + $0x58] sm:$0xff]
    %v597 = vld [vmem:[%s12 + $0x60] sm:$0xff]
    %v598 = vld [vmem:[%s12 + $0x68] sm:$0xff]
    %v599 = vld [vmem:[%s12 + $0x70] sm:$0xff]
    %v600 = vld [vmem:[%s12 + $0x78] sm:$0xff]
    %v601 = vld [vmem:[%s13] sm:$0x1]
    %v603 = vlaneseq
    %v604 = vshrl.u32 %v603, 7
    %v605 = vsub.s32 0, %v604
    %v606 = vrot.slane %v601, %v605
    %608 = vmatprep.subr.mxu0 0.0
    %609 = vmatpush1.msra.mxu0 %v600
    %610 = vmatprep.subr.mxu0 0.0
    %611 = vmatpush1.msra.mxu0 %v599
    %612 = vmatprep.subr.mxu0 0.0
    %613 = vmatpush1.msra.mxu0 %v598
    %614 = vmatprep.subr.mxu0 0.0
    %615 = vmatpush1.msra.mxu0 %v597
    %616 = vmatprep.subr.mxu0 0.0
    %617 = vmatpush1.msra.mxu0 %v596
    %618 = vmatprep.subr.mxu0 0.0
    %619 = vmatpush1.msra.mxu0 %v595
    %620 = vmatprep.subr.mxu0 0.0
    %621 = vmatpush1.msra.mxu0 %v594
    %622 = vmatprep.subr.mxu0 0.0
    %623 = vmatpush1.msra.mxu0 %v593
    %624 = vmatprep.subr.mxu0 0.0
    %625 = vmatpush1.msra.mxu0 %v592
    %626 = vmatprep.subr.mxu0 0.0
    %627 = vmatpush1.msra.mxu0 %v591
    %628 = vmatprep.subr.mxu0 0.0
    %629 = vmatpush1.msra.mxu0 %v590
    %630 = vmatprep.subr.mxu0 0.0
    %631 = vmatpush1.msra.mxu0 %v589
    %632 = vmatprep.subr.mxu0 0.0
    %633 = vmatpush1.msra.mxu0 %v588
    %634 = vmatprep.subr.mxu0 0.0
    %635 = vmatpush1.msra.mxu0 %v587
    %636 = vmatprep.subr.mxu0 0.0
    %637 = vmatpush1.msra.mxu0 %v586
    %638 = vmatprep.subr.mxu0 0.0
    %639 = vmatpush1.msra.mxu0 %v585
    %640 = vmatprep.subr.mxu0 0.0
    %641 = vmatpush2.msra.mxu0 0.0
    %642 = vmatprep.subr.mxu0 0.0
    %643 = vmatpush2.msra.mxu0 0.0
    %644 = vmatprep.subr.mxu0 0.0
    %645 = vmatpush2.msra.mxu0 0.0
    %646 = vmatprep.subr.mxu0 0.0
    %647 = vmatpush2.msra.mxu0 0.0
    %648 = vmatprep.subr.mxu0 0.0
    %649 = vmatpush2.msra.mxu0 0.0
    %650 = vmatprep.subr.mxu0 0.0
    %651 = vmatpush2.msra.mxu0 0.0
    %652 = vmatprep.subr.mxu0 0.0
    %653 = vmatpush2.msra.mxu0 0.0
    %654 = vmatprep.subr.mxu0 0.0
    %655 = vmatpush2.msra.mxu0 0.0
    %656 = vmatprep.subr.mxu0 0.0
    %657 = vmatpush2.msra.mxu0 0.0
    %658 = vmatprep.subr.mxu0 0.0
    %659 = vmatpush2.msra.mxu0 0.0
    %660 = vmatprep.subr.mxu0 0.0
    %661 = vmatpush2.msra.mxu0 0.0
    %662 = vmatprep.subr.mxu0 0.0
    %663 = vmatpush2.msra.mxu0 0.0
    %664 = vmatprep.subr.mxu0 0.0
    %665 = vmatpush2.msra.mxu0 0.0
    %666 = vmatprep.subr.mxu0 0.0
    %667 = vmatpush2.msra.mxu0 0.0
    %668 = vmatprep.subr.mxu0 0.0
    %669 = vmatpush2.msra.mxu0 0.0
    %670 = vmatprep.subr.mxu0 0.0
    %671 = vmatpush2.msra.mxu0 0.0
    %672 = vmatprep.mubr.f32.mxu0 0.0
    %673 = vmatmul.mubr.f32.gmra.mxu0 %v583
    %v674 = vpop.f32.mrf.mxu0
    %v675 = vadd.f32 %v606, %v674
    %v676 = vpop.f32.mrf.mxu0
    %677 = vmatprep.mubr.f32.mxu0 0.0
    %678 = vmatmul.mubr.f32.gmra.mxu0 %v584
    %v679 = vpop.f32.mrf.mxu0
    %v680 = vadd.f32 %v606, %v679
    %v681 = vpop.f32.mrf.mxu0
    %682 = vdwg.mxu0
    %683 = vst [vmem:[#allocation2] sm:$0xff] %v675
    %684 = vst [vmem:[#allocation2 + $0x8] sm:$0xff] %v680
    %685 = vst [vmem:[%s15] sm:$0xff] %v363
    %686 = vst [vmem:[%s15 + $0x8] sm:$0xff] %v365
    %687 = vst [vmem:[%s15 + $0x10] sm:$0xff] %v369
    %688 = vst [vmem:[%s15 + $0x18] sm:$0xff] %v371
    // Predicated region
    $region58: #{vae_forward.1} parent=1 // pred_check
      _
    $region59: #{vae_forward.1} parent=1 // pred_check_branch
      %690 = sbr.rel (0) target = $region61
    $region60: #{vae_forward.1} parent=1 // pred_region
      %s692 = ssub.s32 256, 256
      %693 = vsyncadd [#allocation3], %s692
      %s694 = sshll.u32 [#allocation2], 4
      %s695 = int_to_ptr.vmem [resolvable:$true] %s694
      %700 = dma.vmem_to_hbm [thread:$0]  %s695, 256, %s14, [#allocation3], 128, 128, 8
    $region61: #{vae_forward.1} parent=1 // pred_fallthru
      _
    // Predicated region
    $region62: #{vae_forward.1} parent=1 // pred_check
      _
    $region63: #{vae_forward.1} parent=1 // pred_check_branch
      %702 = sbr.rel (0) target = $region65
    $region64: #{vae_forward.1} parent=1 // pred_region
      _
    $region65: #{vae_forward.1} parent=1 // pred_fallthru
      _
    // Predicated region
    $region66: #{vae_forward.1} parent=1 // pred_check
      _
    $region67: #{vae_forward.1} parent=1 // pred_check_branch
      %704 = sbr.rel (0) target = $region69
    $region68: #{vae_forward.1} parent=1 // pred_region
      %705 = dma.done [#allocation3], 256
    $region69: #{vae_forward.1} parent=1 // pred_fallthru
      _
    // Predicated region
    $region70: #{vae_forward.1} parent=1 // pred_check
      _
    $region71: #{vae_forward.1} parent=1 // pred_check_branch
      %707 = sbr.rel (0) target = $region73
    $region72: #{vae_forward.1} parent=1 // pred_region
      _
    $region73: #{vae_forward.1} parent=1 // pred_fallthru
      _
    %708 = vsyncpa [#allocation3], 1

</llo_original>
